<compile_context>
chip_gen: v7x
topology: tpu7x:2x2x1
jax: 0.10.0
libtpu: 0.0.40
codegen_flags: <defaults>
</compile_context>

<pallas_src>
import functools

import jax
import jax.numpy as jnp
from jax import lax
from jax.experimental import pallas as pl
from jax.experimental.pallas import tpu as pltpu

# --- "module __init__" parameters (deterministic, baked in-script) ---
GAMMA = 2
ALPHA = (0.5, 0.5)
N_CLASS = 2

_LANE = 128
_SUBLANE = 8
_MAX_TILE_ROWS = 4096            # per-step rows: 4 MiB logits + 2 MiB labels (f32/i32)
_MAX_B_TILE = 16                 # cap on batch folding (bounds static unroll in kernel)
_CHUNK = 32                      # fused inner chunk (rows): intermediates stay in vregs
_VMEM_LIMIT = 32 * 1024 * 1024   # explicit scoped-VMEM limit (v5e default is only 16 MiB)


def _pick_chunk(rows_per_tile):
    for c in (_CHUNK, 16, 8):
        if rows_per_tile % c == 0:
            return c
    return 8  # unreachable: rows_per_tile is always a multiple of 8


def _choose_tiles(n_batch, rows):
    """Returns (b_tile, rows_per_tile, num_s_tiles)."""
    if rows > _MAX_TILE_ROWS:
        # Large images: tile spatially; the ragged tail is masked in-kernel.
        return 1, _MAX_TILE_ROWS, pl.cdiv(rows, _MAX_TILE_ROWS)
    # Whole image fits in one tile: fold batch to amortize the ~0.35us/step
    # overhead, but keep >= 2 grid steps when possible (v7x megacore).
    cap = max(1, _MAX_TILE_ROWS // rows)
    cap = min(cap, _MAX_B_TILE)
    if n_batch >= 2:
        cap = min(cap, max(1, n_batch // 2))
    b_tile = 1
    for d in range(min(n_batch, cap), 0, -1):
        if n_batch % d == 0:
            b_tile = d
            break
    rows_per_tile, num_s_tiles = rows, 1
    if n_batch // b_tile == 1 and rows > _SUBLANE:
        # Single grid step (N == 1): split spatially so both v7x TensorCores get
        # work; the second tile's ragged tail is masked in-kernel.
        rows_per_tile = ((rows + 2 * _SUBLANE - 1) // (2 * _SUBLANE)) * _SUBLANE
        num_s_tiles = pl.cdiv(rows, rows_per_tile)
    return b_tile, rows_per_tile, num_s_tiles


def _focal_loss_kernel(x_ref, t_ref, o_ref, *, b_tile, rows_per_tile, chunk,
                       rows_valid, need_pos_mask, fold_alpha):
    """Fused focal loss + partial reduction for one (b_tile, rows_per_tile) block.

    x_ref: (b_tile, 2, rows_per_tile, 128) logits
    t_ref: (b_tile, rows_per_tile, 128)    int32 labels (-1 marks padding)
    o_ref: (8, 128)                        per-step partial sums
    """
    n_chunks = rows_per_tile // chunk

    if need_pos_mask:
        row_base = pl.program_id(1) * rows_per_tile
        local_rows = lax.broadcasted_iota(jnp.int32, (chunk, _LANE), 0)

    def chunk_loss(b, c):
        off = c * chunk
        if not isinstance(off, int):
            off = pl.multiple_of(off, chunk)
        x0 = x_ref[b, 0, pl.ds(off, chunk), :].astype(jnp.float32)
        x1 = x_ref[b, 1, pl.ds(off, chunk), :].astype(jnp.float32)
        t = t_ref[b, pl.ds(off, chunk), :]
        is0 = t == 0
        # 2-class softmax prob of the target class == sigmoid(signed margin).
        dm = x1 - x0
        d = jnp.where(is0, -dm, dm)
        # NOTE: pl.reciprocal(..., approx=True) would push the divide onto the
        # otherwise-idle EUP slot, but the kernel is HBM-bound and exact f32
        # keeps the result within 1e-5 of the f32 softmax reference.
        pt = 1.0 / (1.0 + jnp.exp(-d))
        pt = jnp.clip(pt, 1e-6, 0.999999)        # clamp-then-log, as in the ref
        log_pt = jnp.log(pt)
        one_minus = 1.0 - pt
        if GAMMA == 0:
            mod = jnp.ones_like(pt)
        else:
            mod = one_minus
            for _ in range(GAMMA - 1):            # explicit multiplies, no pow
                mod = mod * one_minus
        loss = mod * log_pt
        if fold_alpha:
            loss = -loss                          # alpha folded into wrapper scale
        else:
            loss = -jnp.where(is0, ALPHA[0], ALPHA[1]) * loss
        # Padded pixels (label == -1) / out-of-range labels contribute zero.
        valid = (t >= 0) & (t < N_CLASS)
        if need_pos_mask:
            # Ragged-tail rows of an edge block hold undefined DMA data: mask
            # on position, independent of the (also undefined) label values.
            valid &= (row_base + off + local_rows) < rows_valid
        return jnp.where(valid, loss, 0.0)        # (chunk, 128)

    def body(c, acc):
        for b in range(b_tile):                   # static; b_tile <= _MAX_B_TILE
            acc = acc + chunk_loss(b, c)
        return acc

    acc0 = jnp.zeros((chunk, _LANE), jnp.float32)
    if n_chunks == 1:
        acc = body(0, acc0)
    else:
        acc = lax.fori_loop(0, n_chunks, body, acc0,
                            unroll=True if n_chunks <= 8 else 4)

    # Fold the (chunk, 128) accumulators into one (8, 128) vreg tile using only
    # VPU adds; the final cross-lane/sublane collapse happens outside the kernel.
    psum = acc[0:_SUBLANE, :]
    for r in range(1, chunk // _SUBLANE):
        psum = psum + acc[r * _SUBLANE:(r + 1) * _SUBLANE, :]
    o_ref[...] = psum


def focal_loss(logits, target):
    """Mean focal loss (reduction='mean').

    logits: (N, 2, H, W) float (f32; bf16 also accepted - kernel computes in f32).
    target: (N, H, W) integer labels.
    """
    N, C, H, W = logits.shape
    assert C == N_CLASS
    S = H * W
    total = float(N * S)

    # Flatten spatial dims and retile as (rows, 128) so every per-pixel op runs
    # on dense (sublane, lane) vregs.  A full-tensor pad (extra HBM copy) only
    # happens when S is not a multiple of 8*128 - rare for real image sizes;
    # ragged tile tails are handled by the in-kernel position mask instead.
    unit = _SUBLANE * _LANE
    s_pad = ((S + unit - 1) // unit) * unit
    x = logits.reshape(N, C, S)
    t = target.astype(jnp.int32).reshape(N, S)
    if s_pad != S:
        x = jnp.pad(x, ((0, 0), (0, 0), (0, s_pad - S)))
        t = jnp.pad(t, ((0, 0), (0, s_pad - S)), constant_values=-1)
    rows = s_pad // _LANE
    x = x.reshape(N, C, rows, _LANE)
    t = t.reshape(N, rows, _LANE)

    b_tile, rows_per_tile, num_s_tiles = _choose_tiles(N, rows)
    chunk = _pick_chunk(rows_per_tile)
    num_b_steps = N // b_tile
    fold_alpha = ALPHA[0] == ALPHA[1]

    kernel = functools.partial(
        _focal_loss_kernel,
        b_tile=b_tile, rows_per_tile=rows_per_tile, chunk=chunk,
        rows_valid=rows,
        need_pos_mask=(num_s_tiles * rows_per_tile != rows),
        fold_alpha=fold_alpha)

    partials = pl.pallas_call(
        kernel,
        out_shape=jax.ShapeDtypeStruct(
            (num_b_steps * num_s_tiles * _SUBLANE, _LANE), jnp.float32),
        grid_spec=pltpu.PrefetchScalarGridSpec(
            num_scalar_prefetch=0,
            grid=(num_b_steps, num_s_tiles),
            in_specs=[
                pl.BlockSpec((b_tile, C, rows_per_tile, _LANE),
                             lambda ib, it: (ib, 0, it, 0)),
                pl.BlockSpec((b_tile, rows_per_tile, _LANE),
                             lambda ib, it: (ib, it, 0)),
            ],
            out_specs=pl.BlockSpec((_SUBLANE, _LANE),
                                   lambda ib, it: (ib * num_s_tiles + it, 0)),
        ),
        compiler_params=pltpu.CompilerParams(
            dimension_semantics=("parallel", "parallel"),
            vmem_limit_bytes=_VMEM_LIMIT,
        ),
    )(x, t)

    # Mean over all N*H*W pixels (padded / masked pixels contributed zeros).
    if fold_alpha:
        return (ALPHA[0] / total) * jnp.sum(partials)
    return jnp.sum(partials) / total


def focal_loss_ref(logits, target):
    """Pure-JAX reference mirroring the PyTorch forward."""
    pt = jax.nn.softmax(logits.astype(jnp.float32), axis=1)
    pt = jnp.clip(pt, 1e-6, 0.999999)
    loss = jnp.zeros(target.shape, jnp.float32)
    for i in range(N_CLASS):
        onehot = (target == i).astype(jnp.float32)
        pti = pt[:, i, :, :]
        loss = loss - ALPHA[i] * (1.0 - pti) ** GAMMA * onehot * jnp.log(pti)
    return jnp.mean(loss)


if __name__ == "__main__":
    key = jax.random.PRNGKey(0)

    test_shapes = [
        (2, 16, 16),    # tiny; exercises the (rare) pad fallback path
        (4, 16, 64),    # exercises batch folding (b_tile = 2)
        (1, 40, 128),   # N == 1; exercises the spatial split + ragged-tail mask
        (2, 64, 512),   # image-like; no pad, chunked fori reduction
    ]
    for idx, (N, H, W) in enumerate(test_shapes):
        k1, k2 = jax.random.split(jax.random.fold_in(key, idx))
        logits = jax.random.normal(k1, (N, N_CLASS, H, W), dtype=jnp.float32)
        target = jax.random.randint(k2, (N, H, W), 0, N_CLASS, dtype=jnp.int32)

        out = jax.block_until_ready(focal_loss(logits, target))
        ref = focal_loss_ref(logits, target)
        assert jnp.allclose(out, ref, rtol=1e-5, atol=1e-5), (N, H, W, out, ref)

    print("KERNEL_OK")
</pallas_src>

<mosaic_0001>
module attributes {stable_mosaic.version = 11 : i64} {
  func.func @_focal_loss_kernel(%arg0: i32, %arg1: i32, %arg2: memref<1x2x8x128xf32, #tpu.memory_space<vmem>>, %arg3: memref<1x8x128xi32, #tpu.memory_space<vmem>>, %arg4: memref<8x128xf32, #tpu.memory_space<vmem>>) attributes {dimension_semantics = [#tpu.dimension_semantics<parallel>, #tpu.dimension_semantics<parallel>], iteration_bounds = array<i64: 2, 1>, scalar_prefetch = 0 : i64, scratch_operands = 0 : i64, tpu.core_type = #tpu.core_type<tc>, window_params = [{transform_indices = @transform_0, window_bounds = array<i64: 1, 2, 8, 128>}, {transform_indices = @transform_1, window_bounds = array<i64: 1, 8, 128>}, {transform_indices = @transform_2, window_bounds = array<i64: 8, 128>}]} {
    %cst = arith.constant 0.000000e+00 : f32
    %0 = vector.broadcast %cst : f32 to vector<8x128xf32>
    %c0 = arith.constant 0 : index
    %c0_0 = arith.constant 0 : index
    %c0_1 = arith.constant 0 : index
    %c0_2 = arith.constant 0 : index
    %1 = vector.load %arg2[%c0, %c0_0, %c0_1, %c0_2] : memref<1x2x8x128xf32, #tpu.memory_space<vmem>>, vector<1x1x8x128xf32>
    %2 = vector.shape_cast %1 : vector<1x1x8x128xf32> to vector<8x128xf32>
    %c0_3 = arith.constant 0 : index
    %c1 = arith.constant 1 : index
    %c0_4 = arith.constant 0 : index
    %c0_5 = arith.constant 0 : index
    %3 = vector.load %arg2[%c0_3, %c1, %c0_4, %c0_5] : memref<1x2x8x128xf32, #tpu.memory_space<vmem>>, vector<1x1x8x128xf32>
    %4 = vector.shape_cast %3 : vector<1x1x8x128xf32> to vector<8x128xf32>
    %c0_6 = arith.constant 0 : index
    %c0_7 = arith.constant 0 : index
    %c0_8 = arith.constant 0 : index
    %5 = vector.load %arg3[%c0_6, %c0_7, %c0_8] : memref<1x8x128xi32, #tpu.memory_space<vmem>>, vector<1x8x128xi32>
    %6 = vector.shape_cast %5 : vector<1x8x128xi32> to vector<8x128xi32>
    %c0_i32 = arith.constant 0 : i32
    %7 = vector.broadcast %c0_i32 : i32 to vector<8x128xi32>
    %8 = arith.cmpi eq, %6, %7 : vector<8x128xi32>
    %9 = arith.subf %4, %2 : vector<8x128xf32>
    %cst_9 = arith.constant 0.000000e+00 : f32
    %10 = vector.broadcast %cst_9 : f32 to vector<8x128xf32>
    %11 = arith.subf %10, %9 : vector<8x128xf32>
    %12 = arith.select %8, %11, %9 : vector<8x128xi1>, vector<8x128xf32>
    %cst_10 = arith.constant 0.000000e+00 : f32
    %13 = vector.broadcast %cst_10 : f32 to vector<8x128xf32>
    %14 = arith.subf %13, %12 : vector<8x128xf32>
    %15 = math.exp %14 : vector<8x128xf32>
    %cst_11 = arith.constant 1.000000e+00 : f32
    %16 = vector.broadcast %cst_11 : f32 to vector<8x128xf32>
    %17 = arith.addf %16, %15 : vector<8x128xf32>
    %cst_12 = arith.constant 1.000000e+00 : f32
    %18 = vector.broadcast %cst_12 : f32 to vector<8x128xf32>
    %19 = arith.divf %18, %17 : vector<8x128xf32>
    %cst_13 = arith.constant 9.99999997E-7 : f32
    %cst_14 = arith.constant 0.999998986 : f32
    %20 = vector.broadcast %cst_13 : f32 to vector<8x128xf32>
    %21 = arith.maximumf %20, %19 : vector<8x128xf32>
    %22 = vector.broadcast %cst_14 : f32 to vector<8x128xf32>
    %23 = arith.minimumf %22, %21 : vector<8x128xf32>
    %24 = math.log %23 : vector<8x128xf32>
    %cst_15 = arith.constant 1.000000e+00 : f32
    %25 = vector.broadcast %cst_15 : f32 to vector<8x128xf32>
    %26 = arith.subf %25, %23 : vector<8x128xf32>
    %27 = arith.mulf %26, %26 : vector<8x128xf32>
    %28 = arith.mulf %27, %24 : vector<8x128xf32>
    %cst_16 = arith.constant 0.000000e+00 : f32
    %29 = vector.broadcast %cst_16 : f32 to vector<8x128xf32>
    %30 = arith.subf %29, %28 : vector<8x128xf32>
    %c0_i32_17 = arith.constant 0 : i32
    %31 = vector.broadcast %c0_i32_17 : i32 to vector<8x128xi32>
    %32 = arith.cmpi sge, %6, %31 : vector<8x128xi32>
    %c2_i32 = arith.constant 2 : i32
    %33 = vector.broadcast %c2_i32 : i32 to vector<8x128xi32>
    %34 = arith.cmpi slt, %6, %33 : vector<8x128xi32>
    %35 = arith.andi %32, %34 : vector<8x128xi1>
    %cst_18 = arith.constant 0.000000e+00 : f32
    %36 = vector.broadcast %cst_18 : f32 to vector<8x128xf32>
    %37 = arith.select %35, %30, %36 : vector<8x128xi1>, vector<8x128xf32>
    %38 = arith.addf %0, %37 : vector<8x128xf32>
    %c0_19 = arith.constant 0 : index
    %c0_20 = arith.constant 0 : index
    %39 = vector.load %arg4[%c0_19, %c0_20] : memref<8x128xf32, #tpu.memory_space<vmem>>, vector<8x128xf32>
    tpu.vector_store %arg4[%c0_19, %c0_20], %38 {strides = array<i32>} : memref<8x128xf32, #tpu.memory_space<vmem>>, vector<8x128xf32>,
    return
  }
  func.func @transform_0(%arg0: i32, %arg1: i32) -> (i32, i32, i32, i32) {
    %c0_i32 = arith.constant 0 : i32
    %c0_i32_0 = arith.constant 0 : i32
    %c0_i32_1 = arith.constant 0 : i32
    return %arg0, %c0_i32, %arg1, %c0_i32_0 : i32, i32, i32, i32
  }
  func.func @transform_1(%arg0: i32, %arg1: i32) -> (i32, i32, i32) {
    %c0_i32 = arith.constant 0 : i32
    %c0_i32_0 = arith.constant 0 : i32
    return %arg0, %arg1, %c0_i32 : i32, i32, i32
  }
  func.func @transform_2(%arg0: i32, %arg1: i32) -> (i32, i32) {
    %c1_i32 = arith.constant 1 : i32
    %0 = arith.muli %arg0, %c1_i32 : i32
    %1 = arith.addi %0, %arg1 : i32
    %c0_i32 = arith.constant 0 : i32
    %c0_i32_0 = arith.constant 0 : i32
    return %1, %c0_i32 : i32, i32
  }
}

</mosaic_0001>

<llo_original>
// kernel: tpu_custom_call.1
$region0: #{tpu_custom_call.1}
  #allocation0 [shape = 'u32[]', space=smem, size = 0x4, offset = 0x4, fixed_abs, tag = 'smem constant byte address 0x4 - core index']
  #allocation1 [shape = 'u32[144,128]{1,0:T(1,128)}', space=vmem, size = 0x12000, scoped, tag = 'internal scratch']
  %s0 = inlined_call_operand.hbm [shape: f32[2,2,8,128], index: 0, kind: input, shape index: {}]
  %s1 = inlined_call_operand.hbm [shape: s32[2,8,128], index: 1, kind: input, shape index: {}]
  %s2 = inlined_call_operand.hbm [shape: f32[16,128], index: 2, kind: output, shape index: {}]
  %s3 = sld [smem:[#allocation0]]
  $region49: #{tpu_custom_call.1} parent=0
    _
  %s5 = ssub.s32 1, %s3
  %s6 = scalar_select 0, %s5, %s3
  $region1: #{tpu_custom_call.1} parent=0
    #allocation2 [shape = 'u8[16384]{0}', space=vmem, size = 0x4000, scoped, tag = 'input window, operand 0']
    #allocation3 [shape = 's32[2]{0}', space=sflag, size = 0x8, scoped, tag = 'scoped memory for tpu_custom_call.1']
    #allocation4 [shape = 's32[2]{0}', space=sflag, size = 0x8, scoped, tag = 'scoped memory for tpu_custom_call.1']
    #allocation5 [shape = 'u8[8192]{0}', space=vmem, size = 0x2000, scoped, tag = 'input window, operand 1']
    #allocation6 [shape = 's32[2]{0}', space=sflag, size = 0x8, scoped, tag = 'scoped memory for tpu_custom_call.1']
    #allocation7 [shape = 'u8[8192]{0}', space=vmem, size = 0x2000, scoped, tag = 'output window, operand 0']
    %7 = vsyncpa [#allocation3], 0
    %s8 = scalar_lea.sflag [#allocation3], 1
    %9 = vsyncpa %s8, 0
    %10 = vsyncpa [#allocation6], 0
    %s11 = scalar_lea.sflag [#allocation6], 1
    %12 = vsyncpa %s11, 0
    %13 = vsyncpa [#allocation4], 0
    %s14 = scalar_lea.sflag [#allocation4], 1
    %15 = vsyncpa %s14, 0
    loop: start=0, step=1, limit=4
    $region2: #{tpu_custom_call.1} parent=1 // loop_pre_header
      _
    $region3: #{tpu_custom_call.1} parent=1 // loop_header
      %s17 = sphi 0, %s21
      %p18 = scmp.ge.s32.totalorder %s17, 4
      %s24 = sphi 0, %s36
      %s25 = sphi 0, %s32
      %s26 = sphi 0, %s24
      %s27 = sphi 0, %s25
      %s28 = sphi 0, %s26
      %s29 = sphi 0, %s27
      %s41 = sphi 0, %s43
      %s44 = sphi 0, %s41
      %s45 = sphi 0, %s44
      %s61 = sphi 0, %s45
      %s69 = sphi 0, %s71
      %s72 = sphi 0, %s69
      %s73 = sphi 0, %s72
      %s89 = sphi 0, %s73
      %s97 = sphi 0, %s99
      %s100 = sphi 0, %s97
      %s101 = sphi 0, %s100
      %s117 = sphi 0, %s101
    $region4: #{tpu_custom_call.1} parent=1 // loop_header_branch
      %20 = sbr.rel (%p18) target = $region8
    $region5: #{tpu_custom_call.1} parent=1 // loop_body
      %s22 = ssub.s32 %s17, 1
      %s23 = ssub.s32 %s17, 2
      %s30 = sadd.s32 1, %s25
      %p31 = scmp.ge.s32.totalorder %s30, 1
      %s32 = scalar_select %p31, 0, %s30
      %s33 = sadd.s32 1, %s24
      %s34 = scalar_select %p31, %s33, %s24
      %p35 = scmp.ge.s32.totalorder %s34, 2
      %s36 = scalar_select %p35, 0, %s34
      %s37 = ssub.s32 %s24, %s36
      %s38 = ssub.s32 %s25, %s32
      %s39 = sor.u32 %s37, %s38
      %p40 = scmp.eq.s32.totalorder %s39, 0
      %s42 = sadd.s32 %s41, 1
      %s43 = scalar_select %p40, %s41, %s42
      %p46 = pneg %p40
      %p47 = scmp.eq.s32.totalorder %s17, 1
      %p48 = por %p46, %p47
      %p49 = scmp.ne.s32.totalorder %s41, %s44
      %p50 = scmp.eq.s32.totalorder %s17, 0
      %p51 = por %p49, %p50
      %p52 = scmp.ne.s32.totalorder %s41, %s44
      %p53 = scmp.eq.s32.totalorder %s22, 1
      %p54 = por %p52, %p53
      %p55 = scmp.ne.s32.totalorder %s44, %s45
      %p56 = scmp.eq.s32.totalorder %s22, 0
      %p57 = por %p55, %p56
      %p58 = scmp.ne.s32.totalorder %s44, %s45
      %p59 = scmp.eq.s32.totalorder %s23, 1
      %p60 = por %p58, %p59
      %p62 = scmp.ne.s32.totalorder %s45, %s61
      %p63 = scmp.eq.s32.totalorder %s23, 0
      %p64 = por %p62, %p63
      %s65 = ssub.s32 %s24, %s36
      %s66 = ssub.s32 %s25, %s32
      %s67 = sor.u32 %s65, %s66
      %p68 = scmp.eq.s32.totalorder %s67, 0
      %s70 = sadd.s32 %s69, 1
      %s71 = scalar_select %p68, %s69, %s70
      %p74 = pneg %p68
      %p75 = scmp.eq.s32.totalorder %s17, 1
      %p76 = por %p74, %p75
      %p77 = scmp.ne.s32.totalorder %s69, %s72
      %p78 = scmp.eq.s32.totalorder %s17, 0
      %p79 = por %p77, %p78
      %p80 = scmp.ne.s32.totalorder %s69, %s72
      %p81 = scmp.eq.s32.totalorder %s22, 1
      %p82 = por %p80, %p81
      %p83 = scmp.ne.s32.totalorder %s72, %s73
      %p84 = scmp.eq.s32.totalorder %s22, 0
      %p85 = por %p83, %p84
      %p86 = scmp.ne.s32.totalorder %s72, %s73
      %p87 = scmp.eq.s32.totalorder %s23, 1
      %p88 = por %p86, %p87
      %p90 = scmp.ne.s32.totalorder %s73, %s89
      %p91 = scmp.eq.s32.totalorder %s23, 0
      %p92 = por %p90, %p91
      %s93 = sadd.s32 %s24, %s25
      %s94 = sadd.s32 %s36, %s32
      %s95 = ssub.s32 %s93, %s94
      %p96 = scmp.eq.s32.totalorder %s95, 0
      %s98 = sadd.s32 %s97, 1
      %s99 = scalar_select %p96, %s97, %s98
      %p102 = pneg %p96
      %p103 = scmp.eq.s32.totalorder %s17, 1
      %p104 = por %p102, %p103
      %p105 = scmp.ne.s32.totalorder %s97, %s100
      %p106 = scmp.eq.s32.totalorder %s17, 0
      %p107 = por %p105, %p106
      %p108 = scmp.ne.s32.totalorder %s97, %s100
      %p109 = scmp.eq.s32.totalorder %s22, 1
      %p110 = por %p108, %p109
      %p111 = scmp.ne.s32.totalorder %s100, %s101
      %p112 = scmp.eq.s32.totalorder %s22, 0
      %p113 = por %p111, %p112
      %p114 = scmp.ne.s32.totalorder %s100, %s101
      %p115 = scmp.eq.s32.totalorder %s23, 1
      %p116 = por %p114, %p115
      %p118 = scmp.ne.s32.totalorder %s101, %s117
      %p119 = scmp.eq.s32.totalorder %s23, 0
      %p120 = por %p118, %p119
      %p121 = scmp.le.s32.totalorder 1, %s17
      %p122 = scmp.lt.s32.totalorder %s17, 3
      %p123 = pnand %p121, %p122
      %p124 = pneg %p123
      // Predicated region
      $region9: #{tpu_custom_call.1} parent=5 // pred_check
        _
      $region10: #{tpu_custom_call.1} parent=5 // pred_check_branch
        %126 = sbr.rel (%p123) target = $region12
      $region11: #{tpu_custom_call.1} parent=5 // pred_region
        %s127 = ssub.s32 %s17, 1
      $region12: #{tpu_custom_call.1} parent=5 // pred_fallthru
        _
      %p128 = scmp.lt.s32.totalorder %s17, 2
      // Predicated region
      $region13: #{tpu_custom_call.1} parent=5 // pred_check
        %p129 = pneg %p128
      $region14: #{tpu_custom_call.1} parent=5 // pred_check_branch
        %131 = sbr.rel (%p129) target = $region16
      $region15: #{tpu_custom_call.1} parent=5 // pred_region
        // Predicated region
        $region17: #{tpu_custom_call.1} parent=15 // pred_check
          %p132 = pneg %p51
        $region18: #{tpu_custom_call.1} parent=15 // pred_check_branch
          %134 = sbr.rel (%p132) target = $region20
        $region19: #{tpu_custom_call.1} parent=15 // pred_region
          %s135 = sand.u32 %s41, 1
          %s136 = scalar_lea.sflag [#allocation3], %s135
          %s137 = sand.u32 %s41, 1
          %s138 = smul.addr %s137, 16
          %s139 = scalar_lea.vmem [#allocation2], %s138
          %s141 = ssub.s32 256, 256
          %142 = vsyncadd %s136, %s141
          %s143 = smul.addr %s24, 2
          %s144 = sadd.s32 %s25, %s143
          %s145 = smul.addr %s144, 128
          %s146 = scalar_lea.hbm %s0, %s145
          %s147 = sshll.u32 %s139, 4
          %s148 = int_to_ptr.vmem [resolvable:$true] %s147
          %153 = dma.hbm_to_vmem [thread:$0]  %s146, 256, %s148, %s136, 128, 128, 8
        $region20: #{tpu_custom_call.1} parent=15 // pred_fallthru
          _
        // Predicated region
        $region21: #{tpu_custom_call.1} parent=15 // pred_check
          %p154 = pneg %p79
        $region22: #{tpu_custom_call.1} parent=15 // pred_check_branch
          %156 = sbr.rel (%p154) target = $region24
        $region23: #{tpu_custom_call.1} parent=15 // pred_region
          %s157 = sand.u32 %s69, 1
          %s158 = scalar_lea.sflag [#allocation6], %s157
          %s159 = sand.u32 %s69, 1
          %s160 = smul.addr %s159, 8
          %s161 = scalar_lea.vmem [#allocation5], %s160
          %s163 = ssub.s32 128, 128
          %164 = vsyncadd %s158, %s163
          %s165 = sadd.s32 %s25, %s24
          %s166 = smul.addr %s165, 128
          %s167 = scalar_lea.hbm %s1, %s166
          %s169 = sshll.u32 %s161, 4
          %s170 = int_to_ptr.vmem [resolvable:$true] %s169
          %172 = dma.hbm_to_vmem [thread:$0]  %s167, 128, %s170, %s158
        $region24: #{tpu_custom_call.1} parent=15 // pred_fallthru
          _
      $region16: #{tpu_custom_call.1} parent=5 // pred_fallthru
        _
      %p173 = scmp.le.s32.totalorder 1, %s17
      %p174 = scmp.lt.s32.totalorder %s17, 3
      %p175 = pnand %p173, %p174
      %p176 = pneg %p175
      // Predicated region
      $region25: #{tpu_custom_call.1} parent=5 // pred_check
        _
      $region26: #{tpu_custom_call.1} parent=5 // pred_check_branch
        %178 = sbr.rel (%p175) target = $region28
      $region27: #{tpu_custom_call.1} parent=5 // pred_region
        %s179 = ssub.s32 %s17, 1
        %s180 = sand.u32 %s44, 1
        %s181 = scalar_lea.sflag [#allocation3], %s180
        %s182 = sand.u32 %s44, 1
        %s183 = smul.addr %s182, 16
        %s184 = scalar_lea.vmem [#allocation2], %s183
        // Predicated region
        $region29: #{tpu_custom_call.1} parent=27 // pred_check
          %p185 = pneg %p57
        $region30: #{tpu_custom_call.1} parent=27 // pred_check_branch
          %187 = sbr.rel (%p185) target = $region32
        $region31: #{tpu_custom_call.1} parent=27 // pred_region
          %188 = dma.done %s181, 256
        $region32: #{tpu_custom_call.1} parent=27 // pred_fallthru
          _
        %s189 = sand.u32 %s72, 1
        %s190 = scalar_lea.sflag [#allocation6], %s189
        %s191 = sand.u32 %s72, 1
        %s192 = smul.addr %s191, 8
        %s193 = scalar_lea.vmem [#allocation5], %s192
        // Predicated region
        $region33: #{tpu_custom_call.1} parent=27 // pred_check
          %p194 = pneg %p85
        $region34: #{tpu_custom_call.1} parent=27 // pred_check_branch
          %196 = sbr.rel (%p194) target = $region36
        $region35: #{tpu_custom_call.1} parent=27 // pred_region
          %197 = dma.done %s190, 128
        $region36: #{tpu_custom_call.1} parent=27 // pred_fallthru
          _
        %s198 = sand.u32 %s44, 1
        %s199 = scalar_lea.sflag [#allocation3], %s198
        %s200 = sand.u32 %s44, 1
        %s201 = smul.addr %s200, 16
        %s202 = scalar_lea.vmem [#allocation2], %s201
        %p203 = pneg %p57
        %p204 = pneg %p54
        %s205 = sand.u32 %s72, 1
        %s206 = scalar_lea.sflag [#allocation6], %s205
        %s207 = sand.u32 %s72, 1
        %s208 = smul.addr %s207, 8
        %s209 = scalar_lea.vmem [#allocation5], %s208
        %p210 = pneg %p85
        %p211 = pneg %p82
        %p212 = pneg %p113
        %p213 = pneg %p110
        %s214 = sand.u32 %s100, 1
        %s215 = scalar_lea.sflag [#allocation4], %s214
        %s216 = sand.u32 %s100, 1
        %s217 = smul.addr %s216, 8
        %s218 = scalar_lea.vmem [#allocation7], %s217
        %s219 = sadd.s32 %s26, %s27
        %v220 = vld [vmem:[%s184] sm:$0xff]
        %s221 = scalar_lea.vmem %s184, 8 [#allocation2]
        %v222 = vld [vmem:[%s221] sm:$0xff]
        %v223 = vld [vmem:[%s193] sm:$0xff]
        %vm224 = vcmp.eq.s32.totalorder %v223, 0
        %v225 = vsub.f32 %v222, %v220
        %v226 = vsub.f32 0.0, %v225
        %v227 = vsel %vm224, %v226, %v225
        %v228 = vsub.f32 0.0, %v227
        %v229 = vmul.f32 %v228, 1.442695
        %v230 = vpow.pop %v229
        %v231 = vadd.f32 %v230, 1.0
        %v232 = vrcp.pop %v231
        %v233 = vmul.f32 1.0, %v232
        %v234 = vmax.f32 %v233, 1e-06
        %v235 = vmin.f32 %v234, 0.999999
        %v236 = vlog2.pop %v235
        %v237 = vmul.f32 %v236, 0.6931472
        %v238 = vsub.f32 1.0, %v235
        %v239 = vmul.f32 %v238, %v238
        %v240 = vmul.f32 %v239, %v237
        %v241 = vsub.f32 0.0, %v240
        %vm242 = vcmp.ge.s32.totalorder %v223, 0
        %vm243 = vcmp.lt.s32.totalorder %v223, 2
        %vm244 = vmand %vm242, %vm243
        %v245 = vsel %vm244, %v241, 0.0
        %v246 = vadd.f32 %v245, 0.0
        %247 = vst [vmem:[%s218] sm:$0xff] %v246
        %s248 = sand.u32 %s100, 1
        %s249 = scalar_lea.sflag [#allocation4], %s248
        %s250 = sand.u32 %s100, 1
        %s251 = smul.addr %s250, 8
        %s252 = scalar_lea.vmem [#allocation7], %s251
        // Predicated region
        $region37: #{tpu_custom_call.1} parent=27 // pred_check
          %p253 = pneg %p110
        $region38: #{tpu_custom_call.1} parent=27 // pred_check_branch
          %255 = sbr.rel (%p253) target = $region40
        $region39: #{tpu_custom_call.1} parent=27 // pred_region
          %s256 = sadd.s32 %s26, %s27
          %s258 = ssub.s32 128, 128
          %259 = vsyncadd %s249, %s258
          %s260 = smul.addr %s256, 128
          %s261 = scalar_lea.hbm %s2, %s260
          %s263 = sshll.u32 %s252, 4
          %s264 = int_to_ptr.vmem [resolvable:$true] %s263
          %266 = dma.vmem_to_hbm [thread:$0]  %s264, 128, %s261, %s249
        $region40: #{tpu_custom_call.1} parent=27 // pred_fallthru
          _
      $region28: #{tpu_custom_call.1} parent=5 // pred_fallthru
        _
      %p267 = scmp.le.s32.totalorder 2, %s17
      // Predicated region
      $region41: #{tpu_custom_call.1} parent=5 // pred_check
        %p268 = pneg %p267
      $region42: #{tpu_custom_call.1} parent=5 // pred_check_branch
        %270 = sbr.rel (%p268) target = $region44
      $region43: #{tpu_custom_call.1} parent=5 // pred_region
        %s271 = ssub.s32 %s17, 2
        // Predicated region
        $region45: #{tpu_custom_call.1} parent=43 // pred_check
          %p272 = pneg %p116
        $region46: #{tpu_custom_call.1} parent=43 // pred_check_branch
          %274 = sbr.rel (%p272) target = $region48
        $region47: #{tpu_custom_call.1} parent=43 // pred_region
          %s275 = sand.u32 %s101, 1
          %s276 = scalar_lea.sflag [#allocation4], %s275
          %s277 = sand.u32 %s101, 1
          %s278 = smul.addr %s277, 8
          %s279 = scalar_lea.vmem [#allocation7], %s278
          %280 = dma.done %s276, 128
        $region48: #{tpu_custom_call.1} parent=43 // pred_fallthru
          _
      $region44: #{tpu_custom_call.1} parent=5 // pred_fallthru
        _
    $region6: #{tpu_custom_call.1} parent=1 // loop_footer
      %s21 = sadd.s32 1, %s17
    $region7: #{tpu_custom_call.1} parent=1 // loop_footer_branch
      %16 = sbr.rel target = $region3
    $region8: #{tpu_custom_call.1} parent=1 // loop_exit
      _
    %281 = vsyncpa [#allocation3], 1
    %s282 = scalar_lea.sflag [#allocation3], 1
    %283 = vsyncpa %s282, 1
    %284 = vsyncpa [#allocation6], 1
    %s285 = scalar_lea.sflag [#allocation6], 1
    %286 = vsyncpa %s285, 1
    %287 = vsyncpa [#allocation4], 1
    %s288 = scalar_lea.sflag [#allocation4], 1
    %289 = vsyncpa %s288, 1

</llo_original>
